<compile_context>
chip_gen: v7x
topology: tpu7x:2x2x1
jax: 0.10.0
libtpu: 0.0.40
codegen_flags: <defaults>
</compile_context>

<pallas_src>
import jax
import jax.numpy as jnp
from jax.experimental import pallas as pl
from jax.experimental.pallas import tpu as pltpu


_TARGET_BLOCK_BYTES = 2 << 20   # ~85% of HBM roofline already at 1-2 MiB blocks
_HARD_BLOCK_BYTES = 4 << 20     # 2x(in+out) double-buffering stays well under
                                # scoped VMEM on v5e/v6e/v7x


# --------------------------------------------------------------------------
# Fused single-pass kernel: one (Bb, C, T) block -> mean, excite, scale.
# --------------------------------------------------------------------------
def _se_fused_kernel(x_ref, w1t_ref, b1_ref, w2t_ref, b2_ref, o_ref):
    _, _, T = x_ref.shape
    # Squeeze: mean over time with f32 accumulation, WITHOUT materializing a
    # block-sized f32 copy of x.
    mean = jnp.sum(x_ref[...], axis=2, dtype=jnp.float32) * (1.0 / float(T))  # (Bb, C)

    # Excitation: two tiny linear layers (fully hidden under the block DMA).
    h = jnp.dot(mean, w1t_ref[...], preferred_element_type=jnp.float32) + b1_ref[...]
    h = jnp.maximum(h, 0.0)                                       # ReLU
    g = jnp.dot(h, w2t_ref[...], preferred_element_type=jnp.float32) + b2_ref[...]
    gate = jax.nn.sigmoid(g)                                      # (Bb, C), EUP

    # Scale: second read of x; cast the tiny gate, not the big block.
    o_ref[...] = x_ref[...] * gate.astype(o_ref.dtype)[:, :, None]


# --------------------------------------------------------------------------
# Two-stage fallback kernels (large C*T per row).
# --------------------------------------------------------------------------
def _make_gate_kernel(inv_t):
    def kernel(x_ref, w1t_ref, b1_ref, w2t_ref, b2_ref, gate_ref, acc_ref):
        t = pl.program_id(1)

        @pl.when(t == 0)
        def _():
            acc_ref[...] = jnp.zeros_like(acc_ref)

        acc_ref[...] += jnp.sum(x_ref[...], axis=2, dtype=jnp.float32)  # (1, C)

        @pl.when(t == pl.num_programs(1) - 1)
        def _():
            mean = acc_ref[...] * inv_t                                  # (1, C)
            h = jnp.dot(mean, w1t_ref[...],
                        preferred_element_type=jnp.float32) + b1_ref[...]
            h = jnp.maximum(h, 0.0)
            g = jnp.dot(h, w2t_ref[...],
                        preferred_element_type=jnp.float32) + b2_ref[...]
            gate_ref[...] = jax.nn.sigmoid(g)[:, None, :]                # (1, 1, C)

    return kernel


def _scale_kernel(x_ref, gate_ref, o_ref):
    # x_ref: (1, C, Tt); gate_ref: (1, C, 1) -> broadcast along lanes (T).
    o_ref[...] = x_ref[...] * gate_ref[...].astype(o_ref.dtype)


# --------------------------------------------------------------------------
# Block-size heuristics.
# --------------------------------------------------------------------------
def _pick_block_b(B, per_row_bytes, target_bytes, hard_cap_bytes):
    """Batch-block size for the fused path, or None if rows are too large."""
    if per_row_bytes > hard_cap_bytes:
        return None                       # fall back to the two-stage path
    hard = max(1, hard_cap_bytes // per_row_bytes)
    tgt = max(1, min(target_bytes // max(1, per_row_bytes), hard, B))
    if B >= 2:
        # Prefer >= 2 grid steps so the "parallel" axis feeds both v7x TCs.
        tgt = min(tgt, max(1, B // 2))
    block_b = max(d for d in range(1, tgt + 1) if B % d == 0)
    # Prime/odd batch sizes can collapse to tiny blocks; if that would mean
    # many overhead-dominated steps, prefer a larger divisor (still under the
    # hard VMEM cap) even at the cost of a smaller grid.
    if block_b * per_row_bytes * 2 < target_bytes and B // block_b > 8:
        bigger = [d for d in range(tgt + 1, min(B, hard) + 1) if B % d == 0]
        if bigger:
            block_b = bigger[0]
    return block_b


def _pick_t_block(T_pad, C, itemsize, target_bytes, hard_cap_bytes):
    """Lane-dense T block (multiple of 128 dividing T_pad) for the 2-stage path."""
    bytes_per_t = max(1, C * itemsize)
    cap = max(128, min(T_pad, hard_cap_bytes // bytes_per_t))
    tgt = max(128, min(cap, target_bytes // bytes_per_t))
    best = 128
    d = 128
    while d <= tgt:
        if T_pad % d == 0:
            best = d
        d += 128
    return best


def _vmem_limit(streaming_bytes, weight_bytes):
    return int(min(56 << 20, max(8 << 20, streaming_bytes + 2 * weight_bytes + (4 << 20))))


# --------------------------------------------------------------------------
# Two-stage path: gate kernel (T reduction) + broadcast-multiply kernel.
# --------------------------------------------------------------------------
def _se_connect_two_stage(x, w1t, b1r, w2t, b2r, *, t_block=None):
    B, C, T = x.shape
    C_r = w1t.shape[1]
    itemsize = jnp.dtype(x.dtype).itemsize
    weight_bytes = 4 * (2 * C * C_r + C + C_r)

    # Pad T to a multiple of 128 so stores stay unmasked lane-dense (zeros do
    # not perturb the sum; the true T is used for the mean; padding is sliced
    # off at the end).
    T_pad = ((T + 127) // 128) * 128
    xp = x if T_pad == T else jnp.pad(x, ((0, 0), (0, 0), (0, T_pad - T)))

    if t_block is None:
        t_block = _pick_t_block(T_pad, C, itemsize, _TARGET_BLOCK_BYTES, _HARD_BLOCK_BYTES)
    t_block = int(t_block)
    n_t = T_pad // t_block
    block_bytes = C * t_block * itemsize

    # ---- stage 1: per-row gate (B, 1, C) ----
    gate = pl.pallas_call(
        _make_gate_kernel(1.0 / float(T)),
        out_shape=jax.ShapeDtypeStruct((B, 1, C), jnp.float32),
        grid_spec=pltpu.PrefetchScalarGridSpec(
            num_scalar_prefetch=0,
            grid=(B, n_t),
            in_specs=[
                pl.BlockSpec((1, C, t_block), lambda b, t: (b, 0, t)),  # x
                pl.BlockSpec((C, C_r), lambda b, t: (0, 0)),            # w1.T
                pl.BlockSpec((1, C_r), lambda b, t: (0, 0)),            # b1
                pl.BlockSpec((C_r, C), lambda b, t: (0, 0)),            # w2.T
                pl.BlockSpec((1, C), lambda b, t: (0, 0)),              # b2
            ],
            out_specs=pl.BlockSpec((1, 1, C), lambda b, t: (b, 0, 0)),
            scratch_shapes=[pltpu.VMEM((1, C), jnp.float32)],
        ),
        compiler_params=pltpu.CompilerParams(
            dimension_semantics=("parallel", "arbitrary"),
            vmem_limit_bytes=_vmem_limit(2 * block_bytes, weight_bytes)),
        cost_estimate=pl.CostEstimate(
            flops=int(B * C * T_pad + 4 * B * C * C_r),
            transcendentals=int(B * C),
            bytes_accessed=int(B * C * T_pad * itemsize + weight_bytes + B * C * 4)),
    )(xp, w1t, b1r, w2t, b2r)

    # ---- stage 2: broadcast multiply, lane-dense T tiles ----
    gate_c1 = gate.reshape(B, C)[:, :, None]                       # (B, C, 1) f32
    out = pl.pallas_call(
        _scale_kernel,
        out_shape=jax.ShapeDtypeStruct((B, C, T_pad), x.dtype),
        grid_spec=pltpu.PrefetchScalarGridSpec(
            num_scalar_prefetch=0,
            grid=(B, n_t),
            in_specs=[
                pl.BlockSpec((1, C, t_block), lambda b, t: (b, 0, t)),  # x
                pl.BlockSpec((1, C, 1), lambda b, t: (b, 0, 0)),        # gate
            ],
            out_specs=pl.BlockSpec((1, C, t_block), lambda b, t: (b, 0, t)),
        ),
        compiler_params=pltpu.CompilerParams(
            dimension_semantics=("parallel", "parallel"),
            vmem_limit_bytes=_vmem_limit(4 * block_bytes, C * 4)),
        cost_estimate=pl.CostEstimate(
            flops=int(B * C * T_pad),
            transcendentals=0,
            bytes_accessed=int(2 * B * C * T_pad * itemsize + B * C * 4)),
    )(xp, gate_c1)

    return out if T_pad == T else out[:, :, :T]


# --------------------------------------------------------------------------
# Public wrapper.
# --------------------------------------------------------------------------
def se_connect_pallas(x, w1, b1, w2, b2, *, block_b=None,
                      force_two_stage=False, t_block=None):
    """SE_Connect forward.

    x  : (B, C, T) float array
    w1 : (C//s, C),  b1 : (C//s,)   -- linear1 (PyTorch (out, in) layout)
    w2 : (C, C//s),  b2 : (C,)      -- linear2
    """
    B, C, T = x.shape
    C_r = w1.shape[0]
    assert w1.shape == (C_r, C), (w1.shape, (C_r, C))
    assert w2.shape == (C, C_r), (w2.shape, (C, C_r))
    assert b1.shape == (C_r,) and b2.shape == (C,)

    # Layout plumbing in the wrapper (not compute): matmul-ready transposed
    # weights and row-shaped biases so the kernel does no in-kernel reshapes.
    w1t = jnp.asarray(w1).T.astype(jnp.float32)          # (C, C_r)
    w2t = jnp.asarray(w2).T.astype(jnp.float32)          # (C_r, C)
    b1r = jnp.asarray(b1).reshape(1, C_r).astype(jnp.float32)
    b2r = jnp.asarray(b2).reshape(1, C).astype(jnp.float32)

    itemsize = jnp.dtype(x.dtype).itemsize
    per_row_bytes = C * T * itemsize
    weight_bytes = 4 * (2 * C * C_r + C + C_r)

    if block_b is None and not force_two_stage:
        block_b = _pick_block_b(B, per_row_bytes, _TARGET_BLOCK_BYTES, _HARD_BLOCK_BYTES)

    if force_two_stage or block_b is None:
        # Rows too large for a single fused block (or explicitly requested):
        # two-stage T-tiled path (one extra read of x, arbitrarily large C*T).
        return _se_connect_two_stage(x, w1t, b1r, w2t, b2r, t_block=t_block)

    block_b = int(max(1, min(B, block_b)))
    while B % block_b:
        block_b -= 1
    grid_b = B // block_b
    block_bytes = block_b * per_row_bytes

    return pl.pallas_call(
        _se_fused_kernel,
        out_shape=jax.ShapeDtypeStruct((B, C, T), x.dtype),
        grid_spec=pltpu.PrefetchScalarGridSpec(
            num_scalar_prefetch=0,
            grid=(grid_b,),
            in_specs=[
                pl.BlockSpec((block_b, C, T), lambda b: (b, 0, 0)),   # x
                pl.BlockSpec((C, C_r), lambda b: (0, 0)),             # w1.T
                pl.BlockSpec((1, C_r), lambda b: (0, 0)),             # b1
                pl.BlockSpec((C_r, C), lambda b: (0, 0)),             # w2.T
                pl.BlockSpec((1, C), lambda b: (0, 0)),               # b2
            ],
            out_specs=pl.BlockSpec((block_b, C, T), lambda b: (b, 0, 0)),
        ),
        compiler_params=pltpu.CompilerParams(
            dimension_semantics=("parallel",),
            vmem_limit_bytes=_vmem_limit(4 * block_bytes, weight_bytes)),
        cost_estimate=pl.CostEstimate(
            flops=int(2 * B * C * T + 4 * B * C * C_r),
            transcendentals=int(B * C),
            bytes_accessed=int(2 * B * C * T * itemsize + weight_bytes)),
    )(x, w1t, b1r, w2t, b2r)


def _reference(x, w1, b1, w2, b2):
    """Pure-JAX reference matching the PyTorch SE_Connect forward."""
    m = x.astype(jnp.float32).mean(axis=2)                       # (B, C)
    h = jax.nn.relu(m @ w1.T + b1)                               # (B, C//s)
    g = jax.nn.sigmoid(h @ w2.T + b2)                            # (B, C)
    return (x.astype(jnp.float32) * g[:, :, None]).astype(x.dtype)


if __name__ == "__main__":
    key = jax.random.PRNGKey(0)
    kx, k1, k2, k3, k4 = jax.random.split(key, 5)

    # Small shapes consistent with the module: (batch, channels, time), s=2.
    B, C, T, s = 4, 32, 256, 2
    C_r = C // s

    x = jax.random.normal(kx, (B, C, T), dtype=jnp.float32)
    w1 = jax.random.normal(k1, (C_r, C), dtype=jnp.float32) / jnp.sqrt(C)
    b1 = 0.1 * jax.random.normal(k2, (C_r,), dtype=jnp.float32)
    w2 = jax.random.normal(k3, (C, C_r), dtype=jnp.float32) / jnp.sqrt(C_r)
    b2 = 0.1 * jax.random.normal(k4, (C,), dtype=jnp.float32)

    ref = _reference(x, w1, b1, w2, b2)

    # 1) Auto block selection: fused path, picks block_b=2 here -> two grid
    #    steps so both v7x TensorCores get work.
    out = jax.block_until_ready(se_connect_pallas(x, w1, b1, w2, b2))
    assert out.shape == x.shape and out.dtype == x.dtype
    assert jnp.allclose(out, ref, atol=1e-5, rtol=1e-5), \
        "Pallas output mismatch vs reference (auto fused path)"

    # 2) Explicit block size (whole batch in one block).
    out2 = jax.block_until_ready(se_connect_pallas(x, w1, b1, w2, b2, block_b=4))
    assert jnp.allclose(out2, ref, atol=1e-5, rtol=1e-5), \
        "Pallas output mismatch vs reference (block_b=4)"

    # 3) Two-stage T-tiled fallback (normally used when one (C, T) row exceeds
    #    the per-block VMEM cap); forced here at small shape with t_block=128
    #    to exercise the reduction + broadcast-multiply kernels.
    out3 = jax.block_until_ready(
        se_connect_pallas(x, w1, b1, w2, b2, force_two_stage=True, t_block=128))
    assert jnp.allclose(out3, ref, atol=1e-5, rtol=1e-5), \
        "Pallas output mismatch vs reference (two-stage path)"

    # TODO(synk): ragged batch blocks (pl.cdiv grid with masked tail) would
    # avoid block_b=1 for large prime batch sizes with tiny rows.
    print("KERNEL_OK")
</pallas_src>

<mosaic_0001>
module attributes {stable_mosaic.version = 11 : i64} {
  func.func @_se_fused_kernel(%arg0: i32, %arg1: memref<2x32x256xf32, #tpu.memory_space<vmem>>, %arg2: memref<32x16xf32, #tpu.memory_space<vmem>>, %arg3: memref<1x16xf32, #tpu.memory_space<vmem>>, %arg4: memref<16x32xf32, #tpu.memory_space<vmem>>, %arg5: memref<1x32xf32, #tpu.memory_space<vmem>>, %arg6: memref<2x32x256xf32, #tpu.memory_space<vmem>>) attributes {dimension_semantics = [#tpu.dimension_semantics<parallel>], iteration_bounds = array<i64: 2>, scalar_prefetch = 0 : i64, scratch_operands = 0 : i64, tpu.core_type = #tpu.core_type<tc>, window_params = [{transform_indices = @transform_0, window_bounds = array<i64: 2, 32, 256>}, {pipeline_mode = #tpu.pipeline_mode<synchronous>, transform_indices = @transform_1, window_bounds = array<i64: 32, 16>}, {pipeline_mode = #tpu.pipeline_mode<synchronous>, transform_indices = @transform_2, window_bounds = array<i64: 1, 16>}, {pipeline_mode = #tpu.pipeline_mode<synchronous>, transform_indices = @transform_3, window_bounds = array<i64: 16, 32>}, {pipeline_mode = #tpu.pipeline_mode<synchronous>, transform_indices = @transform_4, window_bounds = array<i64: 1, 32>}, {transform_indices = @transform_5, window_bounds = array<i64: 2, 32, 256>}]} {
    %c0 = arith.constant 0 : index
    %c0_0 = arith.constant 0 : index
    %c0_1 = arith.constant 0 : index
    %0 = vector.load %arg1[%c0, %c0_0, %c0_1] : memref<2x32x256xf32, #tpu.memory_space<vmem>>, vector<2x32x256xf32>
    %cst = arith.constant dense<0.000000e+00> : vector<2x32xf32>
    %1 = vector.multi_reduction <add>, %0, %cst [2] : vector<2x32x256xf32> to vector<2x32xf32>
    %cst_2 = arith.constant 3.906250e-03 : f32
    %2 = vector.broadcast %cst_2 : f32 to vector<2x32xf32>
    %3 = arith.mulf %1, %2 : vector<2x32xf32>
    %c0_3 = arith.constant 0 : index
    %c0_4 = arith.constant 0 : index
    %4 = vector.load %arg2[%c0_3, %c0_4] : memref<32x16xf32, #tpu.memory_space<vmem>>, vector<32x16xf32>
    %cst_5 = arith.constant dense<0.000000e+00> : vector<2x16xf32>
    %5 = tpu.matmul %3, %4, %cst_5 {dimension_numbers = #tpu.dot_dimension_numbers<[1], [0], [0], [1], [0, 0, 1, 1], [], []>} : vector<2x32xf32>, vector<32x16xf32>, vector<2x16xf32> -> vector<2x16xf32>
    %c0_6 = arith.constant 0 : index
    %c0_7 = arith.constant 0 : index
    %6 = vector.load %arg3[%c0_6, %c0_7] : memref<1x16xf32, #tpu.memory_space<vmem>>, vector<1x16xf32>
    %7 = vector.broadcast %6 : vector<1x16xf32> to vector<2x16xf32>
    %8 = arith.addf %5, %7 : vector<2x16xf32>
    %cst_8 = arith.constant 0.000000e+00 : f32
    %9 = vector.broadcast %cst_8 : f32 to vector<2x16xf32>
    %10 = arith.maximumf %8, %9 : vector<2x16xf32>
    %c0_9 = arith.constant 0 : index
    %c0_10 = arith.constant 0 : index
    %11 = vector.load %arg4[%c0_9, %c0_10] : memref<16x32xf32, #tpu.memory_space<vmem>>, vector<16x32xf32>
    %cst_11 = arith.constant dense<0.000000e+00> : vector<2x32xf32>
    %12 = tpu.matmul %10, %11, %cst_11 {dimension_numbers = #tpu.dot_dimension_numbers<[1], [0], [0], [1], [0, 0, 1, 1], [], []>} : vector<2x16xf32>, vector<16x32xf32>, vector<2x32xf32> -> vector<2x32xf32>
    %c0_12 = arith.constant 0 : index
    %c0_13 = arith.constant 0 : index
    %13 = vector.load %arg5[%c0_12, %c0_13] : memref<1x32xf32, #tpu.memory_space<vmem>>, vector<1x32xf32>
    %14 = vector.broadcast %13 : vector<1x32xf32> to vector<2x32xf32>
    %15 = arith.addf %12, %14 : vector<2x32xf32>
    %16 = arith.negf %15 : vector<2x32xf32>
    %17 = math.exp %16 : vector<2x32xf32>
    %cst_14 = arith.constant 1.000000e+00 : f32
    %18 = vector.broadcast %cst_14 : f32 to vector<2x32xf32>
    %19 = arith.addf %18, %17 : vector<2x32xf32>
    %20 = arith.divf %18, %19 : vector<2x32xf32>
    %c0_15 = arith.constant 0 : index
    %c0_16 = arith.constant 0 : index
    %c0_17 = arith.constant 0 : index
    %21 = vector.load %arg1[%c0_15, %c0_16, %c0_17] : memref<2x32x256xf32, #tpu.memory_space<vmem>>, vector<2x32x256xf32>
    %22 = vector.shape_cast %20 : vector<2x32xf32> to vector<2x32x1xf32>
    %23 = vector.broadcast %22 : vector<2x32x1xf32> to vector<2x32x256xf32>
    %24 = arith.mulf %21, %23 : vector<2x32x256xf32>
    %c0_18 = arith.constant 0 : index
    %c0_19 = arith.constant 0 : index
    %c0_20 = arith.constant 0 : index
    %25 = vector.load %arg6[%c0_18, %c0_19, %c0_20] : memref<2x32x256xf32, #tpu.memory_space<vmem>>, vector<2x32x256xf32>
    tpu.vector_store %arg6[%c0_18, %c0_19, %c0_20], %24 {strides = array<i32>} : memref<2x32x256xf32, #tpu.memory_space<vmem>>, vector<2x32x256xf32>,
    return
  }
  func.func @transform_0(%arg0: i32) -> (i32, i32, i32) {
    %c0_i32 = arith.constant 0 : i32
    %c0_i32_0 = arith.constant 0 : i32
    %c0_i32_1 = arith.constant 0 : i32
    return %arg0, %c0_i32, %c0_i32_0 : i32, i32, i32
  }
  func.func @transform_1(%arg0: i32) -> (i32, i32) {
    %c0_i32 = arith.constant 0 : i32
    %c0_i32_0 = arith.constant 0 : i32
    %c0_i32_1 = arith.constant 0 : i32
    return %c0_i32, %c0_i32_0 : i32, i32
  }
  func.func @transform_2(%arg0: i32) -> (i32, i32) {
    %c0_i32 = arith.constant 0 : i32
    %c0_i32_0 = arith.constant 0 : i32
    %c0_i32_1 = arith.constant 0 : i32
    return %c0_i32, %c0_i32_0 : i32, i32
  }
  func.func @transform_3(%arg0: i32) -> (i32, i32) {
    %c0_i32 = arith.constant 0 : i32
    %c0_i32_0 = arith.constant 0 : i32
    %c0_i32_1 = arith.constant 0 : i32
    return %c0_i32, %c0_i32_0 : i32, i32
  }
  func.func @transform_4(%arg0: i32) -> (i32, i32) {
    %c0_i32 = arith.constant 0 : i32
    %c0_i32_0 = arith.constant 0 : i32
    %c0_i32_1 = arith.constant 0 : i32
    return %c0_i32, %c0_i32_0 : i32, i32
  }
  func.func @transform_5(%arg0: i32) -> (i32, i32, i32) {
    %c0_i32 = arith.constant 0 : i32
    %c0_i32_0 = arith.constant 0 : i32
    %c0_i32_1 = arith.constant 0 : i32
    return %arg0, %c0_i32, %c0_i32_0 : i32, i32, i32
  }
}

</mosaic_0001>

<llo_original>
// kernel: tpu_custom_call.1
$region0: #{tpu_custom_call.1}
  #allocation0 [shape = 'u32[]', space=smem, size = 0x4, offset = 0x4, fixed_abs, tag = 'smem constant byte address 0x4 - core index']
  #allocation1 [shape = 'u32[144,128]{1,0:T(1,128)}', space=vmem, size = 0x12000, scoped, tag = 'internal scratch']
  %s0 = inlined_call_operand.hbm [shape: f32[4,32,256], index: 0, kind: input, shape index: {}]
  %s1 = inlined_call_operand.vmem [shape: f32[32,16], index: 1, kind: input, shape index: {}]
  %s2 = inlined_call_operand.vmem [shape: f32[1,16], index: 2, kind: input, shape index: {}]
  %s3 = inlined_call_operand.vmem [shape: f32[16,32], index: 3, kind: input, shape index: {}]
  %s4 = inlined_call_operand.vmem [shape: f32[1,32], index: 4, kind: input, shape index: {}]
  %s5 = inlined_call_operand.hbm [shape: f32[4,32,256], index: 5, kind: output, shape index: {}]
  %s6 = sld [smem:[#allocation0]]
  $region57: #{tpu_custom_call.1} parent=0
    _
  %s8 = ssub.s32 1, %s6
  %s9 = scalar_select 0, %s8, %s6
  $region1: #{tpu_custom_call.1} parent=0
    #allocation2 [shape = 'u8[131072]{0}', space=vmem, size = 0x20000, scoped, tag = 'input window, operand 0']
    #allocation3 [shape = 's32[2]{0}', space=sflag, size = 0x8, scoped, tag = 'scoped memory for tpu_custom_call.1']
    #allocation4 [shape = 's32[2]{0}', space=sflag, size = 0x8, scoped, tag = 'scoped memory for tpu_custom_call.1']
    #allocation5 [shape = 'u8[131072]{0}', space=vmem, size = 0x20000, scoped, tag = 'output window, operand 0']
    %10 = vsyncpa [#allocation3], 0
    %s11 = scalar_lea.sflag [#allocation3], 1
    %12 = vsyncpa %s11, 0
    %13 = vsyncpa [#allocation4], 0
    %s14 = scalar_lea.sflag [#allocation4], 1
    %15 = vsyncpa %s14, 0
    loop: start=0, step=1, limit=4
    $region2: #{tpu_custom_call.1} parent=1 // loop_pre_header
      _
    $region3: #{tpu_custom_call.1} parent=1 // loop_header
      %s17 = sphi 0, %s21
      %p18 = scmp.ge.s32.totalorder %s17, 4
      %s27 = sphi 0, %s29
      %s30 = sphi 0, %s27
      %s31 = sphi 0, %s30
      %s47 = sphi 0, %s31
      %s51 = sphi 0, %s51
      %s53 = sphi 0, %s51
      %s54 = sphi 0, %s53
      %s68 = sphi 0, %s54
      %s72 = sphi 0, %s72
      %s74 = sphi 0, %s72
      %s75 = sphi 0, %s74
      %s89 = sphi 0, %s75
      %s93 = sphi 0, %s93
      %s95 = sphi 0, %s93
      %s96 = sphi 0, %s95
      %s110 = sphi 0, %s96
      %s114 = sphi 0, %s114
      %s116 = sphi 0, %s114
      %s117 = sphi 0, %s116
      %s131 = sphi 0, %s117
      %s137 = sphi 0, %s139
      %s140 = sphi 0, %s137
      %s141 = sphi 0, %s140
      %s157 = sphi 0, %s141
    $region4: #{tpu_custom_call.1} parent=1 // loop_header_branch
      %20 = sbr.rel (%p18) target = $region8
    $region5: #{tpu_custom_call.1} parent=1 // loop_body
      %s22 = ssub.s32 %s17, 1
      %s23 = ssub.s32 %s17, 2
      %s24 = sadd.s32 %s17, 1
      %s25 = ssub.s32 %s17, %s24
      %p26 = scmp.eq.s32.totalorder %s25, 0
      %s28 = sadd.s32 %s27, 1
      %s29 = scalar_select %p26, %s27, %s28
      %p32 = pneg %p26
      %p33 = scmp.eq.s32.totalorder %s17, 1
      %p34 = por %p32, %p33
      %p35 = scmp.ne.s32.totalorder %s27, %s30
      %p36 = scmp.eq.s32.totalorder %s17, 0
      %p37 = por %p35, %p36
      %p38 = scmp.ne.s32.totalorder %s27, %s30
      %p39 = scmp.eq.s32.totalorder %s22, 1
      %p40 = por %p38, %p39
      %p41 = scmp.ne.s32.totalorder %s30, %s31
      %p42 = scmp.eq.s32.totalorder %s22, 0
      %p43 = por %p41, %p42
      %p44 = scmp.ne.s32.totalorder %s30, %s31
      %p45 = scmp.eq.s32.totalorder %s23, 1
      %p46 = por %p44, %p45
      %p48 = scmp.ne.s32.totalorder %s31, %s47
      %p49 = scmp.eq.s32.totalorder %s23, 0
      %p50 = por %p48, %p49
      %s52 = sadd.s32 %s51, 1
      %p55 = scmp.eq.s32.totalorder %s17, 1
      %p56 = scmp.ne.s32.totalorder %s51, %s53
      %p57 = scmp.eq.s32.totalorder %s17, 0
      %p58 = por %p56, %p57
      %p59 = scmp.ne.s32.totalorder %s51, %s53
      %p60 = scmp.eq.s32.totalorder %s22, 1
      %p61 = por %p59, %p60
      %p62 = scmp.ne.s32.totalorder %s53, %s54
      %p63 = scmp.eq.s32.totalorder %s22, 0
      %p64 = por %p62, %p63
      %p65 = scmp.ne.s32.totalorder %s53, %s54
      %p66 = scmp.eq.s32.totalorder %s23, 1
      %p67 = por %p65, %p66
      %p69 = scmp.ne.s32.totalorder %s54, %s68
      %p70 = scmp.eq.s32.totalorder %s23, 0
      %p71 = por %p69, %p70
      %s73 = sadd.s32 %s72, 1
      %p76 = scmp.eq.s32.totalorder %s17, 1
      %p77 = scmp.ne.s32.totalorder %s72, %s74
      %p78 = scmp.eq.s32.totalorder %s17, 0
      %p79 = por %p77, %p78
      %p80 = scmp.ne.s32.totalorder %s72, %s74
      %p81 = scmp.eq.s32.totalorder %s22, 1
      %p82 = por %p80, %p81
      %p83 = scmp.ne.s32.totalorder %s74, %s75
      %p84 = scmp.eq.s32.totalorder %s22, 0
      %p85 = por %p83, %p84
      %p86 = scmp.ne.s32.totalorder %s74, %s75
      %p87 = scmp.eq.s32.totalorder %s23, 1
      %p88 = por %p86, %p87
      %p90 = scmp.ne.s32.totalorder %s75, %s89
      %p91 = scmp.eq.s32.totalorder %s23, 0
      %p92 = por %p90, %p91
      %s94 = sadd.s32 %s93, 1
      %p97 = scmp.eq.s32.totalorder %s17, 1
      %p98 = scmp.ne.s32.totalorder %s93, %s95
      %p99 = scmp.eq.s32.totalorder %s17, 0
      %p100 = por %p98, %p99
      %p101 = scmp.ne.s32.totalorder %s93, %s95
      %p102 = scmp.eq.s32.totalorder %s22, 1
      %p103 = por %p101, %p102
      %p104 = scmp.ne.s32.totalorder %s95, %s96
      %p105 = scmp.eq.s32.totalorder %s22, 0
      %p106 = por %p104, %p105
      %p107 = scmp.ne.s32.totalorder %s95, %s96
      %p108 = scmp.eq.s32.totalorder %s23, 1
      %p109 = por %p107, %p108
      %p111 = scmp.ne.s32.totalorder %s96, %s110
      %p112 = scmp.eq.s32.totalorder %s23, 0
      %p113 = por %p111, %p112
      %s115 = sadd.s32 %s114, 1
      %p118 = scmp.eq.s32.totalorder %s17, 1
      %p119 = scmp.ne.s32.totalorder %s114, %s116
      %p120 = scmp.eq.s32.totalorder %s17, 0
      %p121 = por %p119, %p120
      %p122 = scmp.ne.s32.totalorder %s114, %s116
      %p123 = scmp.eq.s32.totalorder %s22, 1
      %p124 = por %p122, %p123
      %p125 = scmp.ne.s32.totalorder %s116, %s117
      %p126 = scmp.eq.s32.totalorder %s22, 0
      %p127 = por %p125, %p126
      %p128 = scmp.ne.s32.totalorder %s116, %s117
      %p129 = scmp.eq.s32.totalorder %s23, 1
      %p130 = por %p128, %p129
      %p132 = scmp.ne.s32.totalorder %s117, %s131
      %p133 = scmp.eq.s32.totalorder %s23, 0
      %p134 = por %p132, %p133
      %s135 = ssub.s32 %s17, %s24
      %p136 = scmp.eq.s32.totalorder %s135, 0
      %s138 = sadd.s32 %s137, 1
      %s139 = scalar_select %p136, %s137, %s138
      %p142 = pneg %p136
      %p143 = scmp.eq.s32.totalorder %s17, 1
      %p144 = por %p142, %p143
      %p145 = scmp.ne.s32.totalorder %s137, %s140
      %p146 = scmp.eq.s32.totalorder %s17, 0
      %p147 = por %p145, %p146
      %p148 = scmp.ne.s32.totalorder %s137, %s140
      %p149 = scmp.eq.s32.totalorder %s22, 1
      %p150 = por %p148, %p149
      %p151 = scmp.ne.s32.totalorder %s140, %s141
      %p152 = scmp.eq.s32.totalorder %s22, 0
      %p153 = por %p151, %p152
      %p154 = scmp.ne.s32.totalorder %s140, %s141
      %p155 = scmp.eq.s32.totalorder %s23, 1
      %p156 = por %p154, %p155
      %p158 = scmp.ne.s32.totalorder %s141, %s157
      %p159 = scmp.eq.s32.totalorder %s23, 0
      %p160 = por %p158, %p159
      %p161 = scmp.le.s32.totalorder 1, %s17
      %p162 = scmp.lt.s32.totalorder %s17, 3
      %p163 = pnand %p161, %p162
      %p164 = pneg %p163
      // Predicated region
      $region9: #{tpu_custom_call.1} parent=5 // pred_check
        _
      $region10: #{tpu_custom_call.1} parent=5 // pred_check_branch
        %166 = sbr.rel (%p163) target = $region12
      $region11: #{tpu_custom_call.1} parent=5 // pred_region
        %s167 = ssub.s32 %s17, 1
        // Predicated region
        $region13: #{tpu_custom_call.1} parent=11 // pred_check
          %p168 = pneg %p64
        $region14: #{tpu_custom_call.1} parent=11 // pred_check_branch
          %170 = sbr.rel (%p168) target = $region16
        $region15: #{tpu_custom_call.1} parent=11 // pred_region
          _
        $region16: #{tpu_custom_call.1} parent=11 // pred_fallthru
          _
        // Predicated region
        $region17: #{tpu_custom_call.1} parent=11 // pred_check
          %p171 = pneg %p85
        $region18: #{tpu_custom_call.1} parent=11 // pred_check_branch
          %173 = sbr.rel (%p171) target = $region20
        $region19: #{tpu_custom_call.1} parent=11 // pred_region
          _
        $region20: #{tpu_custom_call.1} parent=11 // pred_fallthru
          _
        // Predicated region
        $region21: #{tpu_custom_call.1} parent=11 // pred_check
          %p174 = pneg %p106
        $region22: #{tpu_custom_call.1} parent=11 // pred_check_branch
          %176 = sbr.rel (%p174) target = $region24
        $region23: #{tpu_custom_call.1} parent=11 // pred_region
          _
        $region24: #{tpu_custom_call.1} parent=11 // pred_fallthru
          _
        // Predicated region
        $region25: #{tpu_custom_call.1} parent=11 // pred_check
          %p177 = pneg %p127
        $region26: #{tpu_custom_call.1} parent=11 // pred_check_branch
          %179 = sbr.rel (%p177) target = $region28
        $region27: #{tpu_custom_call.1} parent=11 // pred_region
          _
        $region28: #{tpu_custom_call.1} parent=11 // pred_fallthru
          _
      $region12: #{tpu_custom_call.1} parent=5 // pred_fallthru
        _
      %p180 = scmp.lt.s32.totalorder %s17, 2
      // Predicated region
      $region29: #{tpu_custom_call.1} parent=5 // pred_check
        %p181 = pneg %p180
      $region30: #{tpu_custom_call.1} parent=5 // pred_check_branch
        %183 = sbr.rel (%p181) target = $region32
      $region31: #{tpu_custom_call.1} parent=5 // pred_region
        // Predicated region
        $region33: #{tpu_custom_call.1} parent=31 // pred_check
          %p184 = pneg %p37
        $region34: #{tpu_custom_call.1} parent=31 // pred_check_branch
          %186 = sbr.rel (%p184) target = $region36
        $region35: #{tpu_custom_call.1} parent=31 // pred_region
          %s187 = sand.u32 %s27, 1
          %s188 = scalar_lea.sflag [#allocation3], %s187
          %s189 = sand.u32 %s27, 1
          %s190 = smul.addr %s189, 128
          %s191 = scalar_lea.vmem [#allocation2], %s190
          %s192 = smul.u32 2, %s17
          %s194 = ssub.s32 2048, 2048
          %195 = vsyncadd %s188, %s194
          %s196 = smul.addr %s192, 8
          %s197 = smul.addr %s196, 128
          %s198 = scalar_lea.hbm %s0, %s197
          %s199 = sshll.u32 %s191, 4
          %s200 = int_to_ptr.vmem [resolvable:$true] %s199
          %205 = dma.hbm_to_vmem [thread:$0]  %s198, 2048, %s200, %s188, 256, 256, 16
        $region36: #{tpu_custom_call.1} parent=31 // pred_fallthru
          _
      $region32: #{tpu_custom_call.1} parent=5 // pred_fallthru
        _
      %p206 = scmp.le.s32.totalorder 1, %s17
      %p207 = scmp.lt.s32.totalorder %s17, 3
      %p208 = pnand %p206, %p207
      %p209 = pneg %p208
      // Predicated region
      $region37: #{tpu_custom_call.1} parent=5 // pred_check
        _
      $region38: #{tpu_custom_call.1} parent=5 // pred_check_branch
        %211 = sbr.rel (%p208) target = $region40
      $region39: #{tpu_custom_call.1} parent=5 // pred_region
        %s212 = ssub.s32 %s17, 1
        %s213 = sand.u32 %s30, 1
        %s214 = scalar_lea.sflag [#allocation3], %s213
        %s215 = sand.u32 %s30, 1
        %s216 = smul.addr %s215, 128
        %s217 = scalar_lea.vmem [#allocation2], %s216
        // Predicated region
        $region41: #{tpu_custom_call.1} parent=39 // pred_check
          %p218 = pneg %p43
        $region42: #{tpu_custom_call.1} parent=39 // pred_check_branch
          %220 = sbr.rel (%p218) target = $region44
        $region43: #{tpu_custom_call.1} parent=39 // pred_region
          %221 = dma.done %s214, 2048
        $region44: #{tpu_custom_call.1} parent=39 // pred_fallthru
          _
        %s222 = sand.u32 %s30, 1
        %s223 = scalar_lea.sflag [#allocation3], %s222
        %s224 = sand.u32 %s30, 1
        %s225 = smul.addr %s224, 128
        %s226 = scalar_lea.vmem [#allocation2], %s225
        %p227 = pneg %p43
        %p228 = pneg %p40
        %p229 = pneg %p64
        %p230 = pneg %p61
        %p231 = pneg %p85
        %p232 = pneg %p82
        %p233 = pneg %p106
        %p234 = pneg %p103
        %p235 = pneg %p127
        %p236 = pneg %p124
        %p237 = pneg %p153
        %p238 = pneg %p150
        %s239 = sand.u32 %s140, 1
        %s240 = scalar_lea.sflag [#allocation4], %s239
        %s241 = sand.u32 %s140, 1
        %s242 = smul.addr %s241, 128
        %s243 = scalar_lea.vmem [#allocation5], %s242
        %s244 = smul.u32 2, %s22
        %s245 = smul.u32 2, %s22
        %v246 = vld [vmem:[%s217] sm:$0xff]
        %v247 = vld [vmem:[%s217 + $0x8] sm:$0xff]
        %v248 = vld [vmem:[%s217 + $0x10] sm:$0xff]
        %v249 = vld [vmem:[%s217 + $0x18] sm:$0xff]
        %v250 = vld [vmem:[%s217 + $0x20] sm:$0xff]
        %v251 = vld [vmem:[%s217 + $0x28] sm:$0xff]
        %v252 = vld [vmem:[%s217 + $0x30] sm:$0xff]
        %v253 = vld [vmem:[%s217 + $0x38] sm:$0xff]
        %v254 = vld [vmem:[%s217 + $0x40] sm:$0xff]
        %v255 = vld [vmem:[%s217 + $0x48] sm:$0xff]
        %v256 = vld [vmem:[%s217 + $0x50] sm:$0xff]
        %v257 = vld [vmem:[%s217 + $0x58] sm:$0xff]
        %v258 = vld [vmem:[%s217 + $0x60] sm:$0xff]
        %v259 = vld [vmem:[%s217 + $0x68] sm:$0xff]
        %v260 = vld [vmem:[%s217 + $0x70] sm:$0xff]
        %v261 = vld [vmem:[%s217 + $0x78] sm:$0xff]
        %v262 = vadd.f32 %v246, %v247
        %263 = vadd.xlane.f32.xlu0 %v262
        %v264 = vpop.xlane.xlu0 %263
        %v265 = vadd.f32 %v248, %v249
        %266 = vadd.xlane.f32.xlu0 %v265
        %v267 = vpop.xlane.xlu0 %266
        %v268 = vadd.f32 %v250, %v251
        %269 = vadd.xlane.f32.xlu0 %v268
        %v270 = vpop.xlane.xlu0 %269
        %v271 = vadd.f32 %v252, %v253
        %272 = vadd.xlane.f32.xlu0 %v271
        %v273 = vpop.xlane.xlu0 %272
        %v274 = vadd.f32 %v254, %v255
        %275 = vadd.xlane.f32.xlu0 %v274
        %v276 = vpop.xlane.xlu0 %275
        %v277 = vadd.f32 %v256, %v257
        %278 = vadd.xlane.f32.xlu0 %v277
        %v279 = vpop.xlane.xlu0 %278
        %v280 = vadd.f32 %v258, %v259
        %281 = vadd.xlane.f32.xlu0 %v280
        %v282 = vpop.xlane.xlu0 %281
        %v283 = vadd.f32 %v260, %v261
        %284 = vadd.xlane.f32.xlu0 %v283
        %v285 = vpop.xlane.xlu0 %284
        %v286 = vmul.f32 %v264, 0.00390625
        %v287 = vmul.f32 %v267, 0.00390625
        %v288 = vmul.f32 %v270, 0.00390625
        %v289 = vmul.f32 %v273, 0.00390625
        %v290 = vmul.f32 %v276, 0.00390625
        %v291 = vmul.f32 %v279, 0.00390625
        %v292 = vmul.f32 %v282, 0.00390625
        %v293 = vmul.f32 %v285, 0.00390625
        %v294 = vld [vmem:[%s1] sm:$0xff]
        %v295 = vld [vmem:[%s1 + $0x8] sm:$0xff]
        %v296 = vld [vmem:[%s1 + $0x10] sm:$0xff]
        %v297 = vld [vmem:[%s1 + $0x18] sm:$0xff]
        %v298 = vld [vmem:[%s2] sm:$0x1]
        %v300 = vlaneseq
        %v301 = vshrl.u32 %v300, 7
        %v302 = vsub.s32 0, %v301
        %v303 = vrot.slane %v298, %v302
        %v313 = vlaneseq
        %v314 = vand.u32 %v313, 127
        %v315 = vlaneseq
        %v316 = vshrl.u32 %v315, 7
        %v317 = vsub.s32 %v314, %v316
        %v318 = vrot.slane %v286, %v317
        %v319 = vadd.s32 %v314, 4294967288
        %v320 = vlaneseq
        %v321 = vshrl.u32 %v320, 7
        %v322 = vsub.s32 %v319, %v321
        %v323 = vrot.slane %v287, %v322
        %vm324 = vcmask 130112
        %v325 = vsel %vm324, %v323, %v318
        %v326 = vadd.s32 %v314, 4294967280
        %v327 = vlaneseq
        %v328 = vshrl.u32 %v327, 7
        %v329 = vsub.s32 %v326, %v328
        %v330 = vrot.slane %v288, %v329
        %vm331 = vcmask 195712
        %v332 = vsel %vm331, %v330, %v325
        %v333 = vadd.s32 %v314, 4294967272
        %v334 = vlaneseq
        %v335 = vshrl.u32 %v334, 7
        %v336 = vsub.s32 %v333, %v335
        %v337 = vrot.slane %v289, %v336
        %vm338 = vcmask 261312
        %v339 = vsel %vm338, %v337, %v332
        %v340 = vlaneseq
        %v341 = vshrl.u32 %v340, 7
        %v342 = vsub.s32 %v314, %v341
        %v343 = vrot.slane %v290, %v342
        %v344 = vlaneseq
        %v345 = vshrl.u32 %v344, 7
        %v346 = vsub.s32 %v319, %v345
        %v347 = vrot.slane %v291, %v346
        %v348 = vsel %vm324, %v347, %v343
        %v349 = vlaneseq
        %v350 = vshrl.u32 %v349, 7
        %v351 = vsub.s32 %v326, %v350
        %v352 = vrot.slane %v292, %v351
        %v353 = vsel %vm331, %v352, %v348
        %v354 = vlaneseq
        %v355 = vshrl.u32 %v354, 7
        %v356 = vsub.s32 %v333, %v355
        %v357 = vrot.slane %v293, %v356
        %v358 = vsel %vm338, %v357, %v353
        %vm359 = vcmask 1041409
        %v360 = vsel %vm359, %v358, %v339
        %vm361 = vcmask 261120
        %v362 = vsel %vm361, %v360, 0
        %364 = vmatprep.subr.mxu0 0.0
        %365 = vmatpush1.msra.mxu0 %v294
        %366 = vmatprep.subr.mxu0 0.0
        %367 = vmatpush1.msra.mxu0 %v295
        %368 = vmatprep.subr.mxu0 0.0
        %369 = vmatpush1.msra.mxu0 %v296
        %370 = vmatprep.subr.mxu0 0.0
        %371 = vmatpush1.msra.mxu0 %v297
        %372 = vmatprep.subr.mxu0 0.0
        %373 = vmatpush1.msra.mxu0 0.0
        %374 = vmatprep.subr.mxu0 0.0
        %375 = vmatpush1.msra.mxu0 0.0
        %376 = vmatprep.subr.mxu0 0.0
        %377 = vmatpush1.msra.mxu0 0.0
        %378 = vmatprep.subr.mxu0 0.0
        %379 = vmatpush1.msra.mxu0 0.0
        %380 = vmatprep.subr.mxu0 0.0
        %381 = vmatpush1.msra.mxu0 0.0
        %382 = vmatprep.subr.mxu0 0.0
        %383 = vmatpush1.msra.mxu0 0.0
        %384 = vmatprep.subr.mxu0 0.0
        %385 = vmatpush1.msra.mxu0 0.0
        %386 = vmatprep.subr.mxu0 0.0
        %387 = vmatpush1.msra.mxu0 0.0
        %388 = vmatprep.subr.mxu0 0.0
        %389 = vmatpush1.msra.mxu0 0.0
        %390 = vmatprep.subr.mxu0 0.0
        %391 = vmatpush1.msra.mxu0 0.0
        %392 = vmatprep.subr.mxu0 0.0
        %393 = vmatpush1.msra.mxu0 0.0
        %394 = vmatprep.subr.mxu0 0.0
        %395 = vmatpush1.msra.mxu0 0.0
        %396 = vmatprep.subr.mxu0 0.0
        %397 = vmatpush1.msra.mxu0 0.0
        %398 = vmatprep.subr.mxu0 0.0
        %399 = vmatpush1.msra.mxu0 0.0
        %400 = vmatprep.subr.mxu0 0.0
        %401 = vmatpush1.msra.mxu0 0.0
        %402 = vmatprep.subr.mxu0 0.0
        %403 = vmatpush1.msra.mxu0 0.0
        %404 = vmatprep.subr.mxu0 0.0
        %405 = vmatpush1.msra.mxu0 0.0
        %406 = vmatprep.subr.mxu0 0.0
        %407 = vmatpush1.msra.mxu0 0.0
        %408 = vmatprep.subr.mxu0 0.0
        %409 = vmatpush1.msra.mxu0 0.0
        %410 = vmatprep.subr.mxu0 0.0
        %411 = vmatpush1.msra.mxu0 0.0
        %412 = vmatprep.subr.mxu0 0.0
        %413 = vmatpush1.msra.mxu0 0.0
        %414 = vmatprep.subr.mxu0 0.0
        %415 = vmatpush1.msra.mxu0 0.0
        %416 = vmatprep.subr.mxu0 0.0
        %417 = vmatpush1.msra.mxu0 0.0
        %418 = vmatprep.subr.mxu0 0.0
        %419 = vmatpush1.msra.mxu0 0.0
        %420 = vmatprep.subr.mxu0 0.0
        %421 = vmatpush1.msra.mxu0 0.0
        %422 = vmatprep.subr.mxu0 0.0
        %423 = vmatpush1.msra.mxu0 0.0
        %424 = vmatprep.subr.mxu0 0.0
        %425 = vmatpush1.msra.mxu0 0.0
        %426 = vmatprep.subr.mxu0 0.0
        %427 = vmatpush1.msra.mxu0 0.0
        %428 = vmatprep.mubr.f32.mxu0 0.0
        %429 = vmatmul.mubr.f32.gmra.mrb[0].mxu0 %v362
        %v430 = vpop.f32.mrb[0].mxu0
        %v431 = vadd.f32 %v303, %v430
        %v432 = vpop.f32.mrb[0].mxu0
        %433 = vdwg.mxu0
        %v434 = vmax.f32 %v431, 0.0
        %v435 = vld [vmem:[%s3] sm:$0xff]
        %v436 = vld [vmem:[%s3 + $0x8] sm:$0xff]
        %v437 = vld [vmem:[%s4] sm:$0x1]
        %v439 = vlaneseq
        %v440 = vshrl.u32 %v439, 7
        %v441 = vsub.s32 0, %v440
        %v442 = vrot.slane %v437, %v441
        %vm444 = vcmask 130048
        %v446 = vsel %vm444, %v434, 0
        %448 = vmatprep.subr.mxu0 0.0
        %449 = vmatpush1.msra.mxu0 %v435
        %450 = vmatprep.subr.mxu0 0.0
        %451 = vmatpush1.msra.mxu0 %v436
        %452 = vmatprep.subr.mxu0 0.0
        %453 = vmatpush1.msra.mxu0 0.0
        %454 = vmatprep.subr.mxu0 0.0
        %455 = vmatpush1.msra.mxu0 0.0
        %456 = vmatprep.subr.mxu0 0.0
        %457 = vmatpush1.msra.mxu0 0.0
        %458 = vmatprep.subr.mxu0 0.0
        %459 = vmatpush1.msra.mxu0 0.0
        %460 = vmatprep.subr.mxu0 0.0
        %461 = vmatpush1.msra.mxu0 0.0
        %462 = vmatprep.subr.mxu0 0.0
        %463 = vmatpush1.msra.mxu0 0.0
        %464 = vmatprep.subr.mxu0 0.0
        %465 = vmatpush1.msra.mxu0 0.0
        %466 = vmatprep.subr.mxu0 0.0
        %467 = vmatpush1.msra.mxu0 0.0
        %468 = vmatprep.subr.mxu0 0.0
        %469 = vmatpush1.msra.mxu0 0.0
        %470 = vmatprep.subr.mxu0 0.0
        %471 = vmatpush1.msra.mxu0 0.0
        %472 = vmatprep.subr.mxu0 0.0
        %473 = vmatpush1.msra.mxu0 0.0
        %474 = vmatprep.subr.mxu0 0.0
        %475 = vmatpush1.msra.mxu0 0.0
        %476 = vmatprep.subr.mxu0 0.0
        %477 = vmatpush1.msra.mxu0 0.0
        %478 = vmatprep.subr.mxu0 0.0
        %479 = vmatpush1.msra.mxu0 0.0
        %480 = vmatprep.subr.mxu0 0.0
        %481 = vmatpush1.msra.mxu0 0.0
        %482 = vmatprep.subr.mxu0 0.0
        %483 = vmatpush1.msra.mxu0 0.0
        %484 = vmatprep.subr.mxu0 0.0
        %485 = vmatpush1.msra.mxu0 0.0
        %486 = vmatprep.subr.mxu0 0.0
        %487 = vmatpush1.msra.mxu0 0.0
        %488 = vmatprep.subr.mxu0 0.0
        %489 = vmatpush1.msra.mxu0 0.0
        %490 = vmatprep.subr.mxu0 0.0
        %491 = vmatpush1.msra.mxu0 0.0
        %492 = vmatprep.subr.mxu0 0.0
        %493 = vmatpush1.msra.mxu0 0.0
        %494 = vmatprep.subr.mxu0 0.0
        %495 = vmatpush1.msra.mxu0 0.0
        %496 = vmatprep.subr.mxu0 0.0
        %497 = vmatpush1.msra.mxu0 0.0
        %498 = vmatprep.subr.mxu0 0.0
        %499 = vmatpush1.msra.mxu0 0.0
        %500 = vmatprep.subr.mxu0 0.0
        %501 = vmatpush1.msra.mxu0 0.0
        %502 = vmatprep.subr.mxu0 0.0
        %503 = vmatpush1.msra.mxu0 0.0
        %504 = vmatprep.subr.mxu0 0.0
        %505 = vmatpush1.msra.mxu0 0.0
        %506 = vmatprep.subr.mxu0 0.0
        %507 = vmatpush1.msra.mxu0 0.0
        %508 = vmatprep.subr.mxu0 0.0
        %509 = vmatpush1.msra.mxu0 0.0
        %510 = vmatprep.subr.mxu0 0.0
        %511 = vmatpush1.msra.mxu0 0.0
        %512 = vmatprep.mubr.f32.mxu0 0.0
        %513 = vmatmul.mubr.f32.gmra.mrb[0].mxu0 %v446
        %v514 = vpop.f32.mrb[0].mxu0
        %v515 = vadd.f32 %v442, %v514
        %v516 = vpop.f32.mrb[0].mxu0
        %517 = vdwg.mxu0
        %v518 = vxor.u32 %v515, 2147483648
        %v519 = vmul.f32 %v518, 1.442695
        %v520 = vpow.pop %v519
        %v521 = vadd.f32 %v520, 1.0
        %v522 = vrcp.pop %v521
        %v523 = vmul.f32 1.0, %v522
        %v524 = vlaneseq
        %v525 = vshrl.u32 %v524, 7
        %v526 = vsub.s32 0, %v525
        %v527 = vrot.slane %v523, %v526
        %529 = vbcast.lane.b32.xlu0 %v527, 256
        %v530 = vpop.permute.xlu0 %529
        %s532 = sor.u32 256, 8
        %533 = vbcast.lane.b32.xlu0 %v527, %s532
        %v534 = vpop.permute.xlu0 %533
        %s536 = sor.u32 256, 16
        %537 = vbcast.lane.b32.xlu0 %v527, %s536
        %v538 = vpop.permute.xlu0 %537
        %s540 = sor.u32 256, 24
        %541 = vbcast.lane.b32.xlu0 %v527, %s540
        %v542 = vpop.permute.xlu0 %541
        %v543 = vlaneseq
        %v544 = vshrl.u32 %v543, 7
        %v545 = vsub.s32 1, %v544
        %v546 = vrot.slane %v523, %v545
        %548 = vbcast.lane.b32.xlu0 %v546, 256
        %v549 = vpop.permute.xlu0 %548
        %s551 = sor.u32 256, 8
        %552 = vbcast.lane.b32.xlu0 %v546, %s551
        %v553 = vpop.permute.xlu0 %552
        %s555 = sor.u32 256, 16
        %556 = vbcast.lane.b32.xlu0 %v546, %s555
        %v557 = vpop.permute.xlu0 %556
        %s559 = sor.u32 256, 24
        %560 = vbcast.lane.b32.xlu0 %v546, %s559
        %v561 = vpop.permute.xlu0 %560
        %v562 = vmul.f32 %v246, %v530
        %v563 = vmul.f32 %v247, %v530
        %v564 = vmul.f32 %v248, %v534
        %v565 = vmul.f32 %v249, %v534
        %v566 = vmul.f32 %v250, %v538
        %v567 = vmul.f32 %v251, %v538
        %v568 = vmul.f32 %v252, %v542
        %v569 = vmul.f32 %v253, %v542
        %v570 = vmul.f32 %v254, %v549
        %v571 = vmul.f32 %v255, %v549
        %v572 = vmul.f32 %v256, %v553
        %v573 = vmul.f32 %v257, %v553
        %v574 = vmul.f32 %v258, %v557
        %v575 = vmul.f32 %v259, %v557
        %v576 = vmul.f32 %v260, %v561
        %v577 = vmul.f32 %v261, %v561
        %578 = vst [vmem:[%s243] sm:$0xff] %v562
        %579 = vst [vmem:[%s243 + $0x8] sm:$0xff] %v563
        %580 = vst [vmem:[%s243 + $0x10] sm:$0xff] %v564
        %581 = vst [vmem:[%s243 + $0x18] sm:$0xff] %v565
        %582 = vst [vmem:[%s243 + $0x20] sm:$0xff] %v566
        %583 = vst [vmem:[%s243 + $0x28] sm:$0xff] %v567
        %584 = vst [vmem:[%s243 + $0x30] sm:$0xff] %v568
        %585 = vst [vmem:[%s243 + $0x38] sm:$0xff] %v569
        %586 = vst [vmem:[%s243 + $0x40] sm:$0xff] %v570
        %587 = vst [vmem:[%s243 + $0x48] sm:$0xff] %v571
        %588 = vst [vmem:[%s243 + $0x50] sm:$0xff] %v572
        %589 = vst [vmem:[%s243 + $0x58] sm:$0xff] %v573
        %590 = vst [vmem:[%s243 + $0x60] sm:$0xff] %v574
        %591 = vst [vmem:[%s243 + $0x68] sm:$0xff] %v575
        %592 = vst [vmem:[%s243 + $0x70] sm:$0xff] %v576
        %593 = vst [vmem:[%s243 + $0x78] sm:$0xff] %v577
        %s594 = sand.u32 %s140, 1
        %s595 = scalar_lea.sflag [#allocation4], %s594
        %s596 = sand.u32 %s140, 1
        %s597 = smul.addr %s596, 128
        %s598 = scalar_lea.vmem [#allocation5], %s597
        // Predicated region
        $region45: #{tpu_custom_call.1} parent=39 // pred_check
          %p599 = pneg %p150
        $region46: #{tpu_custom_call.1} parent=39 // pred_check_branch
          %601 = sbr.rel (%p599) target = $region48
        $region47: #{tpu_custom_call.1} parent=39 // pred_region
          %s602 = smul.u32 2, %s22
          %s604 = ssub.s32 2048, 2048
          %605 = vsyncadd %s595, %s604
          %s606 = smul.addr %s602, 8
          %s607 = smul.addr %s606, 128
          %s608 = scalar_lea.hbm %s5, %s607
          %s609 = sshll.u32 %s598, 4
          %s610 = int_to_ptr.vmem [resolvable:$true] %s609
          %615 = dma.vmem_to_hbm [thread:$0]  %s610, 2048, %s608, %s595, 256, 256, 16
        $region48: #{tpu_custom_call.1} parent=39 // pred_fallthru
          _
      $region40: #{tpu_custom_call.1} parent=5 // pred_fallthru
        _
      %p616 = scmp.le.s32.totalorder 2, %s17
      // Predicated region
      $region49: #{tpu_custom_call.1} parent=5 // pred_check
        %p617 = pneg %p616
      $region50: #{tpu_custom_call.1} parent=5 // pred_check_branch
        %619 = sbr.rel (%p617) target = $region52
      $region51: #{tpu_custom_call.1} parent=5 // pred_region
        %s620 = ssub.s32 %s17, 2
        // Predicated region
        $region53: #{tpu_custom_call.1} parent=51 // pred_check
          %p621 = pneg %p156
        $region54: #{tpu_custom_call.1} parent=51 // pred_check_branch
          %623 = sbr.rel (%p621) target = $region56
        $region55: #{tpu_custom_call.1} parent=51 // pred_region
          %s624 = sand.u32 %s141, 1
          %s625 = scalar_lea.sflag [#allocation4], %s624
          %s626 = sand.u32 %s141, 1
          %s627 = smul.addr %s626, 128
          %s628 = scalar_lea.vmem [#allocation5], %s627
          %629 = dma.done %s625, 2048
        $region56: #{tpu_custom_call.1} parent=51 // pred_fallthru
          _
      $region52: #{tpu_custom_call.1} parent=5 // pred_fallthru
        _
    $region6: #{tpu_custom_call.1} parent=1 // loop_footer
      %s21 = sadd.s32 1, %s17
    $region7: #{tpu_custom_call.1} parent=1 // loop_footer_branch
      %16 = sbr.rel target = $region3
    $region8: #{tpu_custom_call.1} parent=1 // loop_exit
      _
    %630 = vsyncpa [#allocation3], 1
    %s631 = scalar_lea.sflag [#allocation3], 1
    %632 = vsyncpa %s631, 1
    %633 = vsyncpa [#allocation4], 1
    %s634 = scalar_lea.sflag [#allocation4], 1
    %635 = vsyncpa %s634, 1

</llo_original>
